<compile_context>
chip_gen: v5e
topology: v5e:2x2
jax: 0.10.0
libtpu: 0.0.40
codegen_flags: <defaults>
</compile_context>

<pallas_src>
import functools

import jax
import jax.numpy as jnp
from jax.experimental import pallas as pl
from jax.experimental.pallas import tpu as pltpu


def _round_up(n, m):
    return ((n + m - 1) // m) * m


def _pad2d(a, rows, cols):
    r, c = a.shape
    if r == rows and c == cols:
        return a
    return jnp.pad(a, ((0, rows - r), (0, cols - c)))


def _ffn_layernorm_kernel(x_ref, w_in_ref, b_in_ref, w_out_ref, b_out_ref,
                          gamma_ref, beta_ref, o_ref, *, eps, h_real):
    # x tile: [TM, Hp] in VMEM, kept in its native dtype (bf16 or f32).
    x = x_ref[...]

    # dense_in + ReLU  (MXU matmul, f32 accumulation; bias is f32)
    h = jnp.dot(x, w_in_ref[...], preferred_element_type=jnp.float32)
    h = jnp.maximum(h + b_in_ref[...], 0.0)

    # dense_out (cast activations back to the weight dtype so the MXU runs at
    # its native bf16 rate when bf16 weights are supplied; no-op for f32).
    y = jnp.dot(h.astype(w_out_ref.dtype), w_out_ref[...],
                preferred_element_type=jnp.float32)

    # dropout == identity (eval), then residual add in f32.
    y = y + b_out_ref[...] + x.astype(jnp.float32)

    # LayerNorm over the real hidden size (padded lanes are exactly zero, so
    # the mean is correct with a 1/H factor; variance masks the padded lanes).
    hp = y.shape[-1]
    inv_h = jnp.float32(1.0 / h_real)
    u = jnp.sum(y, axis=-1, keepdims=True) * inv_h
    d = y - u
    if hp > h_real:
        col = jax.lax.broadcasted_iota(jnp.int32, (1, hp), 1)
        d = jnp.where(col < h_real, d, 0.0)
    s = jnp.sum(d * d, axis=-1, keepdims=True) * inv_h
    y_hat = d * jax.lax.rsqrt(s + eps)          # rsqrt -> EUP slot, not VALU

    o_ref[...] = (gamma_ref[...] * y_hat + beta_ref[...]).astype(o_ref.dtype)


def intermediate_forward(x, w_in, b_in, w_out, b_out, gamma, beta,
                         *, eps=1e-12, tm=256):
    """x: [M, H]; w_in: [H, I]; b_in: [I]; w_out: [I, H]; b_out/gamma/beta: [H].

    x / w_in / w_out may be bf16 (recommended) or f32; matmuls accumulate in
    f32.  Biases and LayerNorm params are promoted to f32 once on the host.
    """
    M, H = x.shape
    I = w_in.shape[1]

    # Lane-dense feature dims (multiples of 128); zero padding keeps the math
    # exact (padded hidden columns of the pre-LN sum are exactly zero).
    Hp = _round_up(H, 128)
    Ip = _round_up(I, 128)

    # Token tile: big for real M, clamped (to a multiple of 8) for tiny M.
    tm = max(8, min(tm, _round_up(M, 8)))
    Mp = _round_up(M, tm)

    x_p = _pad2d(x, Mp, Hp)
    w_in_p = _pad2d(w_in, Hp, Ip)
    w_out_p = _pad2d(w_out, Ip, Hp)
    b_in_p = _pad2d(b_in.reshape(1, I).astype(jnp.float32), 1, Ip)
    b_out_p = _pad2d(b_out.reshape(1, H).astype(jnp.float32), 1, Hp)
    gamma_p = _pad2d(gamma.reshape(1, H).astype(jnp.float32), 1, Hp)
    beta_p = _pad2d(beta.reshape(1, H).astype(jnp.float32), 1, Hp)

    kernel = functools.partial(_ffn_layernorm_kernel, eps=eps, h_real=H)

    # Weights/biases use constant index_maps -> fetched once, resident in VMEM.
    out = pl.pallas_call(
        kernel,
        out_shape=jax.ShapeDtypeStruct((Mp, Hp), x.dtype),
        grid_spec=pltpu.PrefetchScalarGridSpec(
            num_scalar_prefetch=0,
            grid=(Mp // tm,),
            in_specs=[
                pl.BlockSpec((tm, Hp), lambda i: (i, 0)),   # x tile
                pl.BlockSpec((Hp, Ip), lambda i: (0, 0)),   # W_in (resident)
                pl.BlockSpec((1, Ip), lambda i: (0, 0)),    # b_in
                pl.BlockSpec((Ip, Hp), lambda i: (0, 0)),   # W_out (resident)
                pl.BlockSpec((1, Hp), lambda i: (0, 0)),    # b_out
                pl.BlockSpec((1, Hp), lambda i: (0, 0)),    # LN weight
                pl.BlockSpec((1, Hp), lambda i: (0, 0)),    # LN bias
            ],
            out_specs=pl.BlockSpec((tm, Hp), lambda i: (i, 0)),
        ),
        compiler_params=pltpu.CompilerParams(
            dimension_semantics=("parallel",),
            vmem_limit_bytes=48 * 1024 * 1024,
        ),
    )(x_p, w_in_p, b_in_p, w_out_p, b_out_p, gamma_p, beta_p)

    return out[:M, :H]


def reference_forward(x, w_in, b_in, w_out, b_out, gamma, beta, eps=1e-12):
    """Mirrors the kernel's dtype semantics (f32 accumulation, f32 epilogue)."""
    b_in = b_in.astype(jnp.float32)
    b_out = b_out.astype(jnp.float32)
    gamma = gamma.astype(jnp.float32)
    beta = beta.astype(jnp.float32)
    h = jnp.dot(x, w_in, preferred_element_type=jnp.float32) + b_in
    h = jnp.maximum(h, 0.0)
    y = jnp.dot(h.astype(w_out.dtype), w_out,
                preferred_element_type=jnp.float32) + b_out
    y = y + x.astype(jnp.float32)
    u = jnp.mean(y, axis=-1, keepdims=True)
    s = jnp.mean((y - u) ** 2, axis=-1, keepdims=True)
    out = gamma * ((y - u) * jax.lax.rsqrt(s + eps)) + beta
    return out.astype(x.dtype)


if __name__ == "__main__":
    # Small shapes consistent with the module: batch=2, seq=8, hidden=32,
    # intermediate=64  ->  tokens M = 16.
    B, S, H, I = 2, 8, 32, 64
    key = jax.random.PRNGKey(0)
    kx, kw1, kb1, kw2, kb2 = jax.random.split(key, 5)

    x_bsh = jax.random.normal(kx, (B, S, H), dtype=jnp.float32)

    # Deterministic parameter init (synthetic, not a checkpoint load).
    w_in = jax.random.normal(kw1, (H, I), dtype=jnp.float32) * 0.05
    b_in = jax.random.normal(kb1, (I,), dtype=jnp.float32) * 0.05
    w_out = jax.random.normal(kw2, (I, H), dtype=jnp.float32) * 0.05
    b_out = jax.random.normal(kb2, (H,), dtype=jnp.float32) * 0.05
    gamma = jnp.ones((H,), dtype=jnp.float32)   # LayerNorm weight (as in __init__)
    beta = jnp.zeros((H,), dtype=jnp.float32)   # LayerNorm bias   (as in __init__)

    x = x_bsh.reshape(B * S, H)  # layout: [tokens, hidden]

    # --- f32 path: exact check against the reference ---
    out = intermediate_forward(x, w_in, b_in, w_out, b_out, gamma, beta)
    out = jax.block_until_ready(out)
    ref = reference_forward(x, w_in, b_in, w_out, b_out, gamma, beta)
    assert out.shape == (B * S, H)
    assert jnp.allclose(out, ref, atol=1e-5, rtol=1e-5), "f32 mismatch vs reference"

    # --- bf16 path (the perf-recommended operand dtype): looser tolerance ---
    xb = x.astype(jnp.bfloat16)
    w_in_b = w_in.astype(jnp.bfloat16)
    w_out_b = w_out.astype(jnp.bfloat16)
    out_b = intermediate_forward(xb, w_in_b, b_in, w_out_b, b_out, gamma, beta)
    out_b = jax.block_until_ready(out_b)
    ref_b = reference_forward(xb, w_in_b, b_in, w_out_b, b_out, gamma, beta)
    assert jnp.allclose(out_b.astype(jnp.float32), ref_b.astype(jnp.float32),
                        atol=5e-2, rtol=5e-2), "bf16 mismatch vs reference"

    _ = out.reshape(B, S, H)  # back to the module's [B, S, H] convention
    print("KERNEL_OK")
</pallas_src>

<mosaic_0001>
module attributes {stable_mosaic.version = 11 : i64} {
  func.func @_ffn_layernorm_kernel(%arg0: i32, %arg1: memref<16x128xf32, #tpu.memory_space<vmem>>, %arg2: memref<128x128xf32, #tpu.memory_space<vmem>>, %arg3: memref<1x128xf32, #tpu.memory_space<vmem>>, %arg4: memref<128x128xf32, #tpu.memory_space<vmem>>, %arg5: memref<1x128xf32, #tpu.memory_space<vmem>>, %arg6: memref<1x128xf32, #tpu.memory_space<vmem>>, %arg7: memref<1x128xf32, #tpu.memory_space<vmem>>, %arg8: memref<16x128xf32, #tpu.memory_space<vmem>>) attributes {dimension_semantics = [#tpu.dimension_semantics<parallel>], iteration_bounds = array<i64: 1>, scalar_prefetch = 0 : i64, scratch_operands = 0 : i64, tpu.core_type = #tpu.core_type<tc>, window_params = [{transform_indices = @transform_0, window_bounds = array<i64: 16, 128>}, {pipeline_mode = #tpu.pipeline_mode<synchronous>, transform_indices = @transform_1, window_bounds = array<i64: 128, 128>}, {pipeline_mode = #tpu.pipeline_mode<synchronous>, transform_indices = @transform_2, window_bounds = array<i64: 1, 128>}, {pipeline_mode = #tpu.pipeline_mode<synchronous>, transform_indices = @transform_3, window_bounds = array<i64: 128, 128>}, {pipeline_mode = #tpu.pipeline_mode<synchronous>, transform_indices = @transform_4, window_bounds = array<i64: 1, 128>}, {pipeline_mode = #tpu.pipeline_mode<synchronous>, transform_indices = @transform_5, window_bounds = array<i64: 1, 128>}, {pipeline_mode = #tpu.pipeline_mode<synchronous>, transform_indices = @transform_6, window_bounds = array<i64: 1, 128>}, {transform_indices = @transform_7, window_bounds = array<i64: 16, 128>}]} {
    %c0 = arith.constant 0 : index
    %c0_0 = arith.constant 0 : index
    %0 = vector.load %arg1[%c0, %c0_0] : memref<16x128xf32, #tpu.memory_space<vmem>>, vector<16x128xf32>
    %c0_1 = arith.constant 0 : index
    %c0_2 = arith.constant 0 : index
    %1 = vector.load %arg2[%c0_1, %c0_2] : memref<128x128xf32, #tpu.memory_space<vmem>>, vector<128x128xf32>
    %cst = arith.constant dense<0.000000e+00> : vector<16x128xf32>
    %2 = tpu.matmul %0, %1, %cst {dimension_numbers = #tpu.dot_dimension_numbers<[1], [0], [0], [1], [0, 0, 1, 1], [], []>} : vector<16x128xf32>, vector<128x128xf32>, vector<16x128xf32> -> vector<16x128xf32>
    %c0_3 = arith.constant 0 : index
    %c0_4 = arith.constant 0 : index
    %3 = vector.load %arg3[%c0_3, %c0_4] : memref<1x128xf32, #tpu.memory_space<vmem>>, vector<1x128xf32>
    %4 = vector.broadcast %3 : vector<1x128xf32> to vector<16x128xf32>
    %5 = arith.addf %2, %4 : vector<16x128xf32>
    %cst_5 = arith.constant 0.000000e+00 : f32
    %6 = vector.broadcast %cst_5 : f32 to vector<16x128xf32>
    %7 = arith.maximumf %5, %6 : vector<16x128xf32>
    %c0_6 = arith.constant 0 : index
    %c0_7 = arith.constant 0 : index
    %8 = vector.load %arg4[%c0_6, %c0_7] : memref<128x128xf32, #tpu.memory_space<vmem>>, vector<128x128xf32>
    %cst_8 = arith.constant dense<0.000000e+00> : vector<16x128xf32>
    %9 = tpu.matmul %7, %8, %cst_8 {dimension_numbers = #tpu.dot_dimension_numbers<[1], [0], [0], [1], [0, 0, 1, 1], [], []>} : vector<16x128xf32>, vector<128x128xf32>, vector<16x128xf32> -> vector<16x128xf32>
    %c0_9 = arith.constant 0 : index
    %c0_10 = arith.constant 0 : index
    %10 = vector.load %arg5[%c0_9, %c0_10] : memref<1x128xf32, #tpu.memory_space<vmem>>, vector<1x128xf32>
    %11 = vector.broadcast %10 : vector<1x128xf32> to vector<16x128xf32>
    %12 = arith.addf %9, %11 : vector<16x128xf32>
    %13 = arith.addf %12, %0 : vector<16x128xf32>
    %cst_11 = arith.constant dense<0.000000e+00> : vector<16xf32>
    %14 = vector.multi_reduction <add>, %13, %cst_11 [1] : vector<16x128xf32> to vector<16xf32>
    %15 = vector.shape_cast %14 : vector<16xf32> to vector<16x1xf32>
    %cst_12 = arith.constant 3.125000e-02 : f32
    %16 = vector.broadcast %cst_12 : f32 to vector<16x1xf32>
    %17 = arith.mulf %15, %16 : vector<16x1xf32>
    %18 = vector.broadcast %17 : vector<16x1xf32> to vector<16x128xf32>
    %19 = arith.subf %13, %18 : vector<16x128xf32>
    %20 = tpu.iota {dimensions = array<i32: 1>} : vector<1x128xi32>
    %c32_i32 = arith.constant 32 : i32
    %21 = vector.broadcast %c32_i32 : i32 to vector<1x128xi32>
    %22 = arith.cmpi slt, %20, %21 : vector<1x128xi32>
    %cst_13 = arith.constant 0.000000e+00 : f32
    %23 = vector.shape_cast %22 : vector<1x128xi1> to vector<1x128xi1>
    %24 = vector.broadcast %23 : vector<1x128xi1> to vector<16x128xi1>
    %25 = vector.broadcast %cst_13 : f32 to vector<16x128xf32>
    %26 = arith.select %24, %19, %25 : vector<16x128xi1>, vector<16x128xf32>
    %27 = arith.mulf %26, %26 : vector<16x128xf32>
    %cst_14 = arith.constant dense<0.000000e+00> : vector<16xf32>
    %28 = vector.multi_reduction <add>, %27, %cst_14 [1] : vector<16x128xf32> to vector<16xf32>
    %29 = vector.shape_cast %28 : vector<16xf32> to vector<16x1xf32>
    %cst_15 = arith.constant 3.125000e-02 : f32
    %30 = vector.broadcast %cst_15 : f32 to vector<16x1xf32>
    %31 = arith.mulf %29, %30 : vector<16x1xf32>
    %cst_16 = arith.constant 9.99999996E-13 : f32
    %32 = vector.broadcast %cst_16 : f32 to vector<16x1xf32>
    %33 = arith.addf %31, %32 : vector<16x1xf32>
    %34 = math.rsqrt %33 : vector<16x1xf32>
    %35 = vector.broadcast %34 : vector<16x1xf32> to vector<16x128xf32>
    %36 = arith.mulf %26, %35 : vector<16x128xf32>
    %c0_17 = arith.constant 0 : index
    %c0_18 = arith.constant 0 : index
    %37 = vector.load %arg6[%c0_17, %c0_18] : memref<1x128xf32, #tpu.memory_space<vmem>>, vector<1x128xf32>
    %38 = vector.broadcast %37 : vector<1x128xf32> to vector<16x128xf32>
    %39 = arith.mulf %38, %36 : vector<16x128xf32>
    %c0_19 = arith.constant 0 : index
    %c0_20 = arith.constant 0 : index
    %40 = vector.load %arg7[%c0_19, %c0_20] : memref<1x128xf32, #tpu.memory_space<vmem>>, vector<1x128xf32>
    %41 = vector.broadcast %40 : vector<1x128xf32> to vector<16x128xf32>
    %42 = arith.addf %39, %41 : vector<16x128xf32>
    %c0_21 = arith.constant 0 : index
    %c0_22 = arith.constant 0 : index
    %43 = vector.load %arg8[%c0_21, %c0_22] : memref<16x128xf32, #tpu.memory_space<vmem>>, vector<16x128xf32>
    tpu.vector_store %arg8[%c0_21, %c0_22], %42 {strides = array<i32>} : memref<16x128xf32, #tpu.memory_space<vmem>>, vector<16x128xf32>,
    return
  }
  func.func @transform_0(%arg0: i32) -> (i32, i32) {
    %c0_i32 = arith.constant 0 : i32
    %c0_i32_0 = arith.constant 0 : i32
    return %arg0, %c0_i32 : i32, i32
  }
  func.func @transform_1(%arg0: i32) -> (i32, i32) {
    %c0_i32 = arith.constant 0 : i32
    %c0_i32_0 = arith.constant 0 : i32
    %c0_i32_1 = arith.constant 0 : i32
    return %c0_i32, %c0_i32_0 : i32, i32
  }
  func.func @transform_2(%arg0: i32) -> (i32, i32) {
    %c0_i32 = arith.constant 0 : i32
    %c0_i32_0 = arith.constant 0 : i32
    %c0_i32_1 = arith.constant 0 : i32
    return %c0_i32, %c0_i32_0 : i32, i32
  }
  func.func @transform_3(%arg0: i32) -> (i32, i32) {
    %c0_i32 = arith.constant 0 : i32
    %c0_i32_0 = arith.constant 0 : i32
    %c0_i32_1 = arith.constant 0 : i32
    return %c0_i32, %c0_i32_0 : i32, i32
  }
  func.func @transform_4(%arg0: i32) -> (i32, i32) {
    %c0_i32 = arith.constant 0 : i32
    %c0_i32_0 = arith.constant 0 : i32
    %c0_i32_1 = arith.constant 0 : i32
    return %c0_i32, %c0_i32_0 : i32, i32
  }
  func.func @transform_5(%arg0: i32) -> (i32, i32) {
    %c0_i32 = arith.constant 0 : i32
    %c0_i32_0 = arith.constant 0 : i32
    %c0_i32_1 = arith.constant 0 : i32
    return %c0_i32, %c0_i32_0 : i32, i32
  }
  func.func @transform_6(%arg0: i32) -> (i32, i32) {
    %c0_i32 = arith.constant 0 : i32
    %c0_i32_0 = arith.constant 0 : i32
    %c0_i32_1 = arith.constant 0 : i32
    return %c0_i32, %c0_i32_0 : i32, i32
  }
  func.func @transform_7(%arg0: i32) -> (i32, i32) {
    %c0_i32 = arith.constant 0 : i32
    %c0_i32_0 = arith.constant 0 : i32
    return %arg0, %c0_i32 : i32, i32
  }
}

</mosaic_0001>

<llo_original>
// kernel: tpu_custom_call.1
$region0: #{tpu_custom_call.1}
  #allocation0 [shape = 'u32[]', space=smem, size = 0x4, offset = 0x4, fixed_abs, tag = 'smem constant byte address 0x4 - core index']
  #allocation1 [shape = 'u32[72,128]{1,0:T(1,128)}', space=vmem, size = 0x9000, scoped, tag = 'internal scratch']
  %s0 = inlined_call_operand.hbm [shape: f32[16,128], index: 0, kind: input, shape index: {}]
  %s1 = inlined_call_operand.hbm [shape: f32[128,128], index: 1, kind: input, shape index: {}]
  %s2 = inlined_call_operand.vmem [shape: f32[1,128], index: 2, kind: input, shape index: {}]
  %s3 = inlined_call_operand.hbm [shape: f32[128,128], index: 3, kind: input, shape index: {}]
  %s4 = inlined_call_operand.vmem [shape: f32[1,128], index: 4, kind: input, shape index: {}]
  %s5 = inlined_call_operand.vmem [shape: f32[1,128], index: 5, kind: input, shape index: {}]
  %s6 = inlined_call_operand.vmem [shape: f32[1,128], index: 6, kind: input, shape index: {}]
  %s7 = inlined_call_operand.hbm [shape: f32[16,128], index: 7, kind: output, shape index: {}]
  %s8 = sld [smem:[#allocation0]]
  $region50: #{tpu_custom_call.1} parent=0
    _
  %s10 = ssub.s32 1, %s8
  %s11 = scalar_select 0, %s10, %s8
  $region1: #{tpu_custom_call.1} parent=0
    #allocation2 [shape = 'u8[8192]{0}', space=vmem, size = 0x2000, scoped, tag = 'input window, operand 0, single buffered']
    #allocation3 [shape = 's32[1]{0}', space=sflag, size = 0x4, scoped, tag = 'scoped memory for tpu_custom_call.1']
    #allocation4 [shape = 's32[1]{0}', space=sflag, size = 0x4, scoped, tag = 'scoped memory for tpu_custom_call.1']
    #allocation5 [shape = 'u8[65536]{0}', space=vmem, size = 0x10000, scoped, tag = 'input window, operand 1, single buffered']
    #allocation6 [shape = 's32[1]{0}', space=sflag, size = 0x4, scoped, tag = 'scoped memory for tpu_custom_call.1']
    #allocation7 [shape = 'u8[65536]{0}', space=vmem, size = 0x10000, scoped, tag = 'input window, operand 3, single buffered']
    #allocation8 [shape = 'u8[8192]{0}', space=vmem, size = 0x2000, scoped, tag = 'output window, operand 0, single buffered']
    %12 = vsyncpa [#allocation3], 0
    %13 = vsyncpa [#allocation6], 0
    %14 = vsyncpa [#allocation4], 0
    // Predicated region
    $region2: #{tpu_custom_call.1} parent=1 // pred_check
      _
    $region3: #{tpu_custom_call.1} parent=1 // pred_check_branch
      %16 = sbr.rel (0) target = $region5
    $region4: #{tpu_custom_call.1} parent=1 // pred_region
      %18 = vsyncadd [#allocation3], 0
      %s19 = sshll.u32 %s0, 4
      %s20 = int_to_ptr.hbm [resolvable:$true] %s19
      %s21 = sshll.u32 [#allocation2], 4
      %s22 = int_to_ptr.vmem [resolvable:$true] %s21
      %27 = dma.hbm_to_vmem [thread:$0]  %s20, 256, %s22, [#allocation3], 128, 128, 8
    $region5: #{tpu_custom_call.1} parent=1 // pred_fallthru
      _
    // Predicated region
    $region6: #{tpu_custom_call.1} parent=1 // pred_check
      _
    $region7: #{tpu_custom_call.1} parent=1 // pred_check_branch
      %29 = sbr.rel (0) target = $region9
    $region8: #{tpu_custom_call.1} parent=1 // pred_region
      %31 = vsyncadd [#allocation6], 0
      %s32 = sshll.u32 %s1, 4
      %s33 = int_to_ptr.hbm [resolvable:$true] %s32
      %s34 = sshll.u32 [#allocation5], 4
      %s35 = int_to_ptr.vmem [resolvable:$true] %s34
      %40 = dma.hbm_to_vmem [thread:$0]  %s33, 2048, %s35, [#allocation6], 128, 128, 8
    $region9: #{tpu_custom_call.1} parent=1 // pred_fallthru
      _
    // Predicated region
    $region10: #{tpu_custom_call.1} parent=1 // pred_check
      _
    $region11: #{tpu_custom_call.1} parent=1 // pred_check_branch
      %42 = sbr.rel (0) target = $region13
    $region12: #{tpu_custom_call.1} parent=1 // pred_region
      _
    $region13: #{tpu_custom_call.1} parent=1 // pred_fallthru
      _
    // Predicated region
    $region14: #{tpu_custom_call.1} parent=1 // pred_check
      _
    $region15: #{tpu_custom_call.1} parent=1 // pred_check_branch
      %44 = sbr.rel (0) target = $region17
    $region16: #{tpu_custom_call.1} parent=1 // pred_region
      %46 = vsyncadd [#allocation6], 0
      %s47 = sshll.u32 %s3, 4
      %s48 = int_to_ptr.hbm [resolvable:$true] %s47
      %s49 = sshll.u32 [#allocation7], 4
      %s50 = int_to_ptr.vmem [resolvable:$true] %s49
      %55 = dma.hbm_to_vmem [thread:$0]  %s48, 2048, %s50, [#allocation6], 128, 128, 8
    $region17: #{tpu_custom_call.1} parent=1 // pred_fallthru
      _
    // Predicated region
    $region18: #{tpu_custom_call.1} parent=1 // pred_check
      _
    $region19: #{tpu_custom_call.1} parent=1 // pred_check_branch
      %57 = sbr.rel (0) target = $region21
    $region20: #{tpu_custom_call.1} parent=1 // pred_region
      _
    $region21: #{tpu_custom_call.1} parent=1 // pred_fallthru
      _
    // Predicated region
    $region22: #{tpu_custom_call.1} parent=1 // pred_check
      _
    $region23: #{tpu_custom_call.1} parent=1 // pred_check_branch
      %59 = sbr.rel (0) target = $region25
    $region24: #{tpu_custom_call.1} parent=1 // pred_region
      _
    $region25: #{tpu_custom_call.1} parent=1 // pred_fallthru
      _
    // Predicated region
    $region26: #{tpu_custom_call.1} parent=1 // pred_check
      _
    $region27: #{tpu_custom_call.1} parent=1 // pred_check_branch
      %61 = sbr.rel (0) target = $region29
    $region28: #{tpu_custom_call.1} parent=1 // pred_region
      _
    $region29: #{tpu_custom_call.1} parent=1 // pred_fallthru
      _
    // Predicated region
    $region30: #{tpu_custom_call.1} parent=1 // pred_check
      _
    $region31: #{tpu_custom_call.1} parent=1 // pred_check_branch
      %63 = sbr.rel (0) target = $region33
    $region32: #{tpu_custom_call.1} parent=1 // pred_region
      %65 = dma.done [#allocation3], 256
    $region33: #{tpu_custom_call.1} parent=1 // pred_fallthru
      _
    // Predicated region
    $region34: #{tpu_custom_call.1} parent=1 // pred_check
      _
    $region35: #{tpu_custom_call.1} parent=1 // pred_check_branch
      %67 = sbr.rel (0) target = $region37
    $region36: #{tpu_custom_call.1} parent=1 // pred_region
      %69 = dma.done [#allocation6], 2048
    $region37: #{tpu_custom_call.1} parent=1 // pred_fallthru
      _
    // Predicated region
    $region38: #{tpu_custom_call.1} parent=1 // pred_check
      _
    $region39: #{tpu_custom_call.1} parent=1 // pred_check_branch
      %71 = sbr.rel (0) target = $region41
    $region40: #{tpu_custom_call.1} parent=1 // pred_region
      %73 = dma.done [#allocation6], 2048
    $region41: #{tpu_custom_call.1} parent=1 // pred_fallthru
      _
    %v74 = vld [vmem:[#allocation2] sm:$0xff]
    %v75 = vld [vmem:[#allocation2 + $0x8] sm:$0xff]
    %v76 = vld [vmem:[#allocation5] sm:$0xff]
    %v77 = vld [vmem:[#allocation5 + $0x8] sm:$0xff]
    %v78 = vld [vmem:[#allocation5 + $0x10] sm:$0xff]
    %v79 = vld [vmem:[#allocation5 + $0x18] sm:$0xff]
    %v80 = vld [vmem:[#allocation5 + $0x20] sm:$0xff]
    %v81 = vld [vmem:[#allocation5 + $0x28] sm:$0xff]
    %v82 = vld [vmem:[#allocation5 + $0x30] sm:$0xff]
    %v83 = vld [vmem:[#allocation5 + $0x38] sm:$0xff]
    %v84 = vld [vmem:[#allocation5 + $0x40] sm:$0xff]
    %v85 = vld [vmem:[#allocation5 + $0x48] sm:$0xff]
    %v86 = vld [vmem:[#allocation5 + $0x50] sm:$0xff]
    %v87 = vld [vmem:[#allocation5 + $0x58] sm:$0xff]
    %v88 = vld [vmem:[#allocation5 + $0x60] sm:$0xff]
    %v89 = vld [vmem:[#allocation5 + $0x68] sm:$0xff]
    %v90 = vld [vmem:[#allocation5 + $0x70] sm:$0xff]
    %v91 = vld [vmem:[#allocation5 + $0x78] sm:$0xff]
    %v92 = vld [vmem:[%s2] sm:$0x1]
    %v94 = vperm.slane %v92, 0
    %96 = vmatpush.msra.mxu0 %v91
    %97 = vmatpush.msra.mxu0 %v90
    %98 = vmatpush.msra.mxu0 %v89
    %99 = vmatpush.msra.mxu0 %v88
    %100 = vmatpush.msra.mxu0 %v87
    %101 = vmatpush.msra.mxu0 %v86
    %102 = vmatpush.msra.mxu0 %v85
    %103 = vmatpush.msra.mxu0 %v84
    %104 = vmatpush.msra.mxu0 %v83
    %105 = vmatpush.msra.mxu0 %v82
    %106 = vmatpush.msra.mxu0 %v81
    %107 = vmatpush.msra.mxu0 %v80
    %108 = vmatpush.msra.mxu0 %v79
    %109 = vmatpush.msra.mxu0 %v78
    %110 = vmatpush.msra.mxu0 %v77
    %111 = vmatpush.msra.mxu0 %v76
    %112 = vmatmul.f32.gmra.mxu0 %v74
    %v113 = vpop.f32.mrf.mxu0
    %v114 = vadd.f32 %v94, %v113
    %115 = vmatmul.f32.gmra.mxu0 %v75
    %v116 = vpop.f32.mrf.mxu0
    %v117 = vadd.f32 %v94, %v116
    %118 = vdwg.mxu0
    %v119 = vmax.f32 %v114, 0.0
    %v120 = vmax.f32 %v117, 0.0
    %v121 = vld [vmem:[#allocation7] sm:$0xff]
    %v122 = vld [vmem:[#allocation7 + $0x8] sm:$0xff]
    %v123 = vld [vmem:[#allocation7 + $0x10] sm:$0xff]
    %v124 = vld [vmem:[#allocation7 + $0x18] sm:$0xff]
    %v125 = vld [vmem:[#allocation7 + $0x20] sm:$0xff]
    %v126 = vld [vmem:[#allocation7 + $0x28] sm:$0xff]
    %v127 = vld [vmem:[#allocation7 + $0x30] sm:$0xff]
    %v128 = vld [vmem:[#allocation7 + $0x38] sm:$0xff]
    %v129 = vld [vmem:[#allocation7 + $0x40] sm:$0xff]
    %v130 = vld [vmem:[#allocation7 + $0x48] sm:$0xff]
    %v131 = vld [vmem:[#allocation7 + $0x50] sm:$0xff]
    %v132 = vld [vmem:[#allocation7 + $0x58] sm:$0xff]
    %v133 = vld [vmem:[#allocation7 + $0x60] sm:$0xff]
    %v134 = vld [vmem:[#allocation7 + $0x68] sm:$0xff]
    %v135 = vld [vmem:[#allocation7 + $0x70] sm:$0xff]
    %v136 = vld [vmem:[#allocation7 + $0x78] sm:$0xff]
    %v137 = vld [vmem:[%s4] sm:$0x1]
    %v139 = vperm.slane %v137, 0
    %141 = vmatpush.msra.mxu0 %v136
    %142 = vmatpush.msra.mxu0 %v135
    %143 = vmatpush.msra.mxu0 %v134
    %144 = vmatpush.msra.mxu0 %v133
    %145 = vmatpush.msra.mxu0 %v132
    %146 = vmatpush.msra.mxu0 %v131
    %147 = vmatpush.msra.mxu0 %v130
    %148 = vmatpush.msra.mxu0 %v129
    %149 = vmatpush.msra.mxu0 %v128
    %150 = vmatpush.msra.mxu0 %v127
    %151 = vmatpush.msra.mxu0 %v126
    %152 = vmatpush.msra.mxu0 %v125
    %153 = vmatpush.msra.mxu0 %v124
    %154 = vmatpush.msra.mxu0 %v123
    %155 = vmatpush.msra.mxu0 %v122
    %156 = vmatpush.msra.mxu0 %v121
    %157 = vmatmul.f32.gmra.mxu0 %v119
    %v158 = vpop.f32.mrf.mxu0
    %v159 = vadd.f32 %v139, %v158
    %160 = vmatmul.f32.gmra.mxu0 %v120
    %v161 = vpop.f32.mrf.mxu0
    %v162 = vadd.f32 %v139, %v161
    %163 = vdwg.mxu0
    %v164 = vadd.f32 %v159, %v74
    %v165 = vadd.f32 %v162, %v75
    %166 = vadd.xlane.f32.xlu0 %v164
    %v167 = vpop.xlane.xlu0 %166
    %168 = vadd.xlane.f32.xlu0 %v165
    %v169 = vpop.xlane.xlu0 %168
    %v170 = vmul.f32 %v167, 0.03125
    %v171 = vmul.f32 %v169, 0.03125
    %v172 = vsub.f32 %v164, %v170
    %v173 = vsub.f32 %v165, %v171
    %v174 = vlaneseq
    %v175 = vand.u32 %v174, 127
    %vm176 = vcmp.lt.s32.totalorder %v175, 32
    %v177 = vsel %vm176, 1, 0
    %vm178 = vcmp.eq.s32.totalorder %v177, 1
    %v179 = vsel %vm178, %v172, 0.0
    %v180 = vsel %vm178, %v173, 0.0
    %v181 = vmul.f32 %v179, %v179
    %v182 = vmul.f32 %v180, %v180
    %183 = vadd.xlane.f32.xlu0 %v181
    %v184 = vpop.xlane.xlu0 %183
    %185 = vadd.xlane.f32.xlu0 %v182
    %v186 = vpop.xlane.xlu0 %185
    %v187 = vmul.f32 %v184, 0.03125
    %v188 = vmul.f32 %v186, 0.03125
    %v189 = vadd.f32 %v187, 1e-12
    %v190 = vadd.f32 %v188, 1e-12
    %v191 = vrsqrt.pop %v189
    %v192 = vmul.f32 %v191, %v189
    %v193 = vmul.f32 %v192, %v191
    %v194 = vmul.f32 0.5, %v193
    %v195 = vsub.f32 1.5, %v194
    %v196 = vmul.f32 %v191, %v195
    %vm197 = vweird.f32 %v189
    %vm198 = vweird.f32 %v191
    %vm199 = vmor %vm197, %vm198
    %v200 = vsel %vm199, %v191, %v196
    %v201 = vrsqrt.pop %v190
    %v202 = vmul.f32 %v201, %v190
    %v203 = vmul.f32 %v202, %v201
    %v204 = vmul.f32 0.5, %v203
    %v205 = vsub.f32 1.5, %v204
    %v206 = vmul.f32 %v201, %v205
    %vm207 = vweird.f32 %v190
    %vm208 = vweird.f32 %v201
    %vm209 = vmor %vm207, %vm208
    %v210 = vsel %vm209, %v201, %v206
    %v211 = vmul.f32 %v179, %v200
    %v212 = vmul.f32 %v180, %v210
    %v213 = vld [vmem:[%s5] sm:$0x1]
    %v215 = vperm.slane %v213, 0
    %v217 = vmul.f32 %v215, %v211
    %v218 = vmul.f32 %v215, %v212
    %v219 = vld [vmem:[%s6] sm:$0x1]
    %v221 = vperm.slane %v219, 0
    %v223 = vadd.f32 %v217, %v221
    %v224 = vadd.f32 %v218, %v221
    %225 = vst [vmem:[#allocation8] sm:$0xff] %v223
    %226 = vst [vmem:[#allocation8 + $0x8] sm:$0xff] %v224
    // Predicated region
    $region42: #{tpu_custom_call.1} parent=1 // pred_check
      _
    $region43: #{tpu_custom_call.1} parent=1 // pred_check_branch
      %228 = sbr.rel (0) target = $region45
    $region44: #{tpu_custom_call.1} parent=1 // pred_region
      %230 = vsyncadd [#allocation4], 0
      %s231 = sshll.u32 [#allocation8], 4
      %s232 = int_to_ptr.vmem [resolvable:$true] %s231
      %s233 = sshll.u32 %s7, 4
      %s234 = int_to_ptr.hbm [resolvable:$true] %s233
      %239 = dma.vmem_to_hbm [thread:$0]  %s232, 256, %s234, [#allocation4], 128, 128, 8
    $region45: #{tpu_custom_call.1} parent=1 // pred_fallthru
      _
    // Predicated region
    $region46: #{tpu_custom_call.1} parent=1 // pred_check
      _
    $region47: #{tpu_custom_call.1} parent=1 // pred_check_branch
      %241 = sbr.rel (0) target = $region49
    $region48: #{tpu_custom_call.1} parent=1 // pred_region
      %243 = dma.done [#allocation4], 256
    $region49: #{tpu_custom_call.1} parent=1 // pred_fallthru
      _
    %244 = vsyncpa [#allocation3], 1
    %245 = vsyncpa [#allocation6], 1
    %246 = vsyncpa [#allocation4], 1

</llo_original>
